<compile_context>
chip_gen: v5e
topology: v5e:2x2
jax: 0.10.0
libtpu: 0.0.40
codegen_flags: <defaults>
</compile_context>

<pallas_src>
import jax
import jax.numpy as jnp
import numpy as np
from jax.experimental import pallas as pl
from jax.experimental.pallas import tpu as pltpu


# ----------------------------- kernel ---------------------------------------

def attnmap_kernel(enc_ref, m_ref, b_ref, out_ref):
    # enc_ref : (1, hw_tile, K)      compute dtype (bf16)
    # m_ref   : (1, K, F_pad)        compute dtype (bf16)
    # b_ref   : (1, F_pad)           float32
    # out_ref : (1, hw_tile, F_pad)  out dtype
    x = enc_ref[0]                                        # (hw_tile, K)
    m = m_ref[0]                                          # (K, F_pad)
    y = jnp.dot(x, m, preferred_element_type=jnp.float32)
    y = y + b_ref[...]                                    # broadcast (1, F_pad)
    out_ref[0] = jnp.maximum(y, 0.0).astype(out_ref.dtype)


# ----------------------------- sizing helpers --------------------------------

def _vmem_caps():
    """(tile-sizing budget, vmem_limit_bytes to request), generation-aware."""
    cap = 128 << 20
    try:
        info = pltpu.get_tpu_info()
        cap = int(getattr(info, "vmem_capacity_bytes", cap))
    except Exception:
        pass  # fall back to the conservative defaults below
    budget = min(cap // 4, 20 << 20)   # double-buffered working-set budget
    limit = min(cap // 2, 32 << 20)    # scoped-VMEM limit to request
    return budget, limit


def _pick_hw_tile(hw, k, f_pad, in_bytes, out_bytes, target, vmem_budget):
    """Largest multiple-of-16 tile <= target whose double-buffered footprint fits."""
    if hw <= 16:
        return hw                       # full-dim block is always legal
    t = (min(target, hw) // 16) * 16

    def footprint(tt):
        return (2 * tt * (k * in_bytes + f_pad * out_bytes)   # enc + out, x2 buffers
                + 2 * k * f_pad * in_bytes                     # M, x2 buffers
                + 2 * f_pad * 4)                               # bias

    while t > 16 and footprint(t) > vmem_budget:
        t -= 16
    return max(t, 16)


# ----------------------------- wrapper ---------------------------------------

def attn_map_forward(btn_dec, btn_enc, weight, bias, num_heads,
                     hw_tile=None, compute_dtype=jnp.bfloat16, out_dtype=None):
    """weight: (btn_features, num_heads*num_query) [torch Linear layout], bias: (btn_features,)."""
    B, T, H, W, GC = btn_enc.shape
    G = num_heads
    C = GC // G
    Q = btn_dec.shape[1] // T
    F = weight.shape[0]
    HW = H * W
    K = GC
    if out_dtype is None:
        out_dtype = compute_dtype

    # ---- Fold the MLP weight into dec (tiny einsum in f32, plain XLA) -------
    # dec channel order is (g c) -> g*C + c ; MLP input order is (q g) -> q*G + g
    dec = btn_dec.astype(jnp.float32).reshape(B, Q, T, G, C)       # (B, Q, T, G, C)
    w = weight.astype(jnp.float32).reshape(F, Q, G)                # W[f, q, g]
    M = jnp.einsum("bqtgc,fqg->btgcf", dec, w).reshape(B * T, K, F)

    # ---- Pad F to a lane-dense multiple of 128 -------------------------------
    F_pad = pl.cdiv(F, 128) * 128
    if F_pad != F:
        M = jnp.pad(M, ((0, 0), (0, 0), (0, F_pad - F)))
        b2 = jnp.pad(bias.astype(jnp.float32), (0, F_pad - F)).reshape(1, F_pad)
    else:
        b2 = bias.astype(jnp.float32).reshape(1, F_pad)

    # ---- bf16 operands: halve the dominant HBM read ahead of the kernel -----
    M = M.astype(compute_dtype)
    enc = btn_enc.reshape(B * T, HW, K).astype(compute_dtype)       # channel-last, no transpose

    # ---- Tile sizing under an explicit (generation-aware) VMEM budget -------
    in_bytes = jnp.dtype(compute_dtype).itemsize
    out_bytes = jnp.dtype(out_dtype).itemsize
    vmem_budget, vmem_limit = _vmem_caps()
    if hw_tile is None:
        hw_tile = _pick_hw_tile(HW, K, F_pad, in_bytes, out_bytes,
                                target=1024, vmem_budget=vmem_budget)
    n_hw = pl.cdiv(HW, hw_tile)                                     # ragged last block is masked

    out = pl.pallas_call(
        attnmap_kernel,
        out_shape=jax.ShapeDtypeStruct((B * T, HW, F_pad), out_dtype),
        grid_spec=pltpu.PrefetchScalarGridSpec(
            num_scalar_prefetch=0,
            grid=(B * T, n_hw),
            in_specs=[
                pl.BlockSpec((1, hw_tile, K), lambda bt, n: (bt, n, 0)),
                pl.BlockSpec((1, K, F_pad), lambda bt, n: (bt, 0, 0)),
                pl.BlockSpec((1, F_pad), lambda bt, n: (0, 0)),
            ],
            out_specs=pl.BlockSpec((1, hw_tile, F_pad), lambda bt, n: (bt, n, 0)),
        ),
        compiler_params=pltpu.CompilerParams(
            dimension_semantics=("parallel", "parallel"),
            vmem_limit_bytes=int(vmem_limit),
        ),
    )(enc, M, b2)

    if F_pad != F:
        out = out[..., :F]
    return out.reshape(B, T, H, W, F)


# ----------------------------- reference -------------------------------------

def attn_map_ref(btn_dec, btn_enc, weight, bias, num_heads):
    """Pure-JAX replica of the PyTorch forward (for verification, f32)."""
    B, T, H, W, GC = btn_enc.shape
    G = num_heads
    C = GC // G
    Q = btn_dec.shape[1] // T
    enc = btn_enc.reshape(B, T, H, W, G, C).transpose(0, 4, 1, 2, 3, 5).reshape(B * G, T, H, W, C)
    dec = btn_dec.reshape(B, Q, T, G, C).transpose(0, 3, 1, 2, 4).reshape(B * G, Q, T, C)
    out = (dec[:, :, :, None, None, :] * enc[:, None, :, :, :, :]).sum(-1)   # (BG, Q, T, H, W)
    out = out.reshape(B, G, Q, T, H, W).transpose(0, 3, 4, 5, 2, 1).reshape(B, T * H * W, Q * G)
    y = jnp.maximum(out @ weight.T + bias, 0.0)
    return y.reshape(B, T, H, W, -1)


# ----------------------------- test ------------------------------------------

if __name__ == "__main__":
    key = jax.random.PRNGKey(0)
    k1, k2, k3, k4 = jax.random.split(key, 4)

    # small shapes consistent with the module
    B, T, H, W = 2, 2, 16, 16
    num_heads, num_query = 2, 4
    btn_features = 32
    C = btn_features // num_heads          # per-head channel dim
    GC = num_heads * C

    btn_enc = jax.random.normal(k1, (B, T, H, W, GC), dtype=jnp.float32)
    btn_dec = jax.random.normal(k2, (B, num_query * T, GC), dtype=jnp.float32)

    # synthetic parameters for nn.Linear(num_heads*num_query, btn_features)
    weight = 0.1 * jax.random.normal(k3, (btn_features, num_heads * num_query), dtype=jnp.float32)
    bias = 0.1 * jax.random.normal(k4, (btn_features,), dtype=jnp.float32)

    ref = attn_map_ref(btn_dec, btn_enc, weight, bias, num_heads)

    # bf16 compute / bf16 output (perf-review path); loosened tolerances accordingly
    out = attn_map_forward(btn_dec, btn_enc, weight, bias, num_heads)
    out = jax.block_until_ready(out)
    np.testing.assert_allclose(np.asarray(out.astype(jnp.float32)), np.asarray(ref),
                               rtol=3e-2, atol=3e-2)

    # ragged-tile coverage: hw_tile (96) does not divide HW (256) -> masked last block
    out_ragged = attn_map_forward(btn_dec, btn_enc, weight, bias, num_heads, hw_tile=96)
    out_ragged = jax.block_until_ready(out_ragged)
    np.testing.assert_allclose(np.asarray(out_ragged.astype(jnp.float32)), np.asarray(ref),
                               rtol=3e-2, atol=3e-2)

    print("KERNEL_OK")
</pallas_src>

<mosaic_0001>
module attributes {stable_mosaic.version = 11 : i64} {
  func.func @attnmap_kernel(%arg0: i32, %arg1: i32, %arg2: memref<1x256x32xbf16, #tpu.memory_space<vmem>>, %arg3: memref<1x32x128xbf16, #tpu.memory_space<vmem>>, %arg4: memref<1x128xf32, #tpu.memory_space<vmem>>, %arg5: memref<1x256x128xbf16, #tpu.memory_space<vmem>>) attributes {dimension_semantics = [#tpu.dimension_semantics<parallel>, #tpu.dimension_semantics<parallel>], iteration_bounds = array<i64: 4, 1>, scalar_prefetch = 0 : i64, scratch_operands = 0 : i64, tpu.core_type = #tpu.core_type<tc>, window_params = [{transform_indices = @transform_0, window_bounds = array<i64: 1, 256, 32>}, {transform_indices = @transform_1, window_bounds = array<i64: 1, 32, 128>}, {pipeline_mode = #tpu.pipeline_mode<synchronous>, transform_indices = @transform_2, window_bounds = array<i64: 1, 128>}, {transform_indices = @transform_3, window_bounds = array<i64: 1, 256, 128>}]} {
    %c0 = arith.constant 0 : index
    %c0_0 = arith.constant 0 : index
    %c0_1 = arith.constant 0 : index
    %0 = vector.load %arg2[%c0, %c0_0, %c0_1] : memref<1x256x32xbf16, #tpu.memory_space<vmem>>, vector<1x256x32xbf16>
    %1 = vector.shape_cast %0 : vector<1x256x32xbf16> to vector<256x32xbf16>
    %c0_2 = arith.constant 0 : index
    %c0_3 = arith.constant 0 : index
    %c0_4 = arith.constant 0 : index
    %2 = vector.load %arg3[%c0_2, %c0_3, %c0_4] : memref<1x32x128xbf16, #tpu.memory_space<vmem>>, vector<1x32x128xbf16>
    %3 = vector.shape_cast %2 : vector<1x32x128xbf16> to vector<32x128xbf16>
    %cst = arith.constant dense<0.000000e+00> : vector<256x128xf32>
    %4 = tpu.matmul %1, %3, %cst {dimension_numbers = #tpu.dot_dimension_numbers<[1], [0], [0], [1], [0, 0, 1, 1], [], []>} : vector<256x32xbf16>, vector<32x128xbf16>, vector<256x128xf32> -> vector<256x128xf32>
    %c0_5 = arith.constant 0 : index
    %c0_6 = arith.constant 0 : index
    %5 = vector.load %arg4[%c0_5, %c0_6] : memref<1x128xf32, #tpu.memory_space<vmem>>, vector<1x128xf32>
    %6 = vector.broadcast %5 : vector<1x128xf32> to vector<256x128xf32>
    %7 = arith.addf %4, %6 : vector<256x128xf32>
    %cst_7 = arith.constant 0.000000e+00 : f32
    %8 = vector.broadcast %cst_7 : f32 to vector<256x128xf32>
    %9 = arith.maximumf %7, %8 : vector<256x128xf32>
    %10 = arith.truncf %9 : vector<256x128xf32> to vector<256x128xbf16>
    %c0_8 = arith.constant 0 : index
    %c0_9 = arith.constant 0 : index
    %c0_10 = arith.constant 0 : index
    %11 = vector.load %arg5[%c0_8, %c0_9, %c0_10] : memref<1x256x128xbf16, #tpu.memory_space<vmem>>, vector<1x256x128xbf16>
    %12 = vector.shape_cast %11 : vector<1x256x128xbf16> to vector<256x128xbf16>
    %13 = vector.shape_cast %10 : vector<256x128xbf16> to vector<1x256x128xbf16>
    tpu.vector_store %arg5[%c0_8, %c0_9, %c0_10], %13 {strides = array<i32>} : memref<1x256x128xbf16, #tpu.memory_space<vmem>>, vector<1x256x128xbf16>,
    return
  }
  func.func @transform_0(%arg0: i32, %arg1: i32) -> (i32, i32, i32) {
    %c0_i32 = arith.constant 0 : i32
    %c0_i32_0 = arith.constant 0 : i32
    return %arg0, %arg1, %c0_i32 : i32, i32, i32
  }
  func.func @transform_1(%arg0: i32, %arg1: i32) -> (i32, i32, i32) {
    %c0_i32 = arith.constant 0 : i32
    %c0_i32_0 = arith.constant 0 : i32
    %c0_i32_1 = arith.constant 0 : i32
    return %arg0, %c0_i32, %c0_i32_0 : i32, i32, i32
  }
  func.func @transform_2(%arg0: i32, %arg1: i32) -> (i32, i32) {
    %c0_i32 = arith.constant 0 : i32
    %c0_i32_0 = arith.constant 0 : i32
    %c0_i32_1 = arith.constant 0 : i32
    return %c0_i32, %c0_i32_0 : i32, i32
  }
  func.func @transform_3(%arg0: i32, %arg1: i32) -> (i32, i32, i32) {
    %c0_i32 = arith.constant 0 : i32
    %c0_i32_0 = arith.constant 0 : i32
    return %arg0, %arg1, %c0_i32 : i32, i32, i32
  }
}

</mosaic_0001>

<llo_original>
// kernel: tpu_custom_call.1
$region0: #{tpu_custom_call.1}
  #allocation0 [shape = 'u32[]', space=smem, size = 0x4, offset = 0x4, fixed_abs, tag = 'smem constant byte address 0x4 - core index']
  #allocation1 [shape = 'u32[72,128]{1,0:T(1,128)}', space=vmem, size = 0x9000, scoped, tag = 'internal scratch']
  %s0 = inlined_call_operand.vmem [shape: bf16[4,256,32], index: 0, kind: input, shape index: {}]
  %s1 = inlined_call_operand.vmem [shape: bf16[4,32,128], index: 1, kind: input, shape index: {}]
  %s2 = inlined_call_operand.vmem [shape: f32[1,128], index: 2, kind: input, shape index: {}]
  %s3 = inlined_call_operand.hbm [shape: bf16[4,256,128], index: 3, kind: output, shape index: {}]
  %s4 = sld [smem:[#allocation0]]
  $region45: #{tpu_custom_call.1} parent=0
    _
  %s6 = ssub.s32 1, %s4
  %s7 = scalar_select 0, %s6, %s4
  $region1: #{tpu_custom_call.1} parent=0
    #allocation2 [shape = 'u8[131072]{0}', space=vmem, size = 0x20000, scoped, tag = 'output window, operand 0']
    #allocation3 [shape = 's32[2]{0}', space=sflag, size = 0x8, scoped, tag = 'scoped memory for tpu_custom_call.1']
    %8 = vsyncpa [#allocation3], 0
    %s9 = scalar_lea.sflag [#allocation3], 1
    %10 = vsyncpa %s9, 0
    loop: start=0, step=1, limit=6
    $region2: #{tpu_custom_call.1} parent=1 // loop_pre_header
      _
    $region3: #{tpu_custom_call.1} parent=1 // loop_header
      %s12 = sphi 0, %s16
      %p13 = scmp.ge.s32.totalorder %s12, 6
      %s19 = sphi 0, %s31
      %s20 = sphi 0, %s27
      %s21 = sphi 0, %s19
      %s22 = sphi 0, %s20
      %s23 = sphi 0, %s21
      %s24 = sphi 0, %s22
      %s36 = sphi 0, %s38
      %s39 = sphi 0, %s36
      %s40 = sphi 0, %s39
      %s56 = sphi 0, %s40
      %s62 = sphi 0, %s64
      %s65 = sphi 0, %s62
      %s66 = sphi 0, %s65
      %s82 = sphi 0, %s66
      %s86 = sphi 0, %s86
      %s88 = sphi 0, %s86
      %s89 = sphi 0, %s88
      %s103 = sphi 0, %s89
      %s111 = sphi 0, %s113
      %s114 = sphi 0, %s111
      %s115 = sphi 0, %s114
      %s131 = sphi 0, %s115
    $region4: #{tpu_custom_call.1} parent=1 // loop_header_branch
      %15 = sbr.rel (%p13) target = $region8
    $region5: #{tpu_custom_call.1} parent=1 // loop_body
      %s17 = ssub.s32 %s12, 1
      %s18 = ssub.s32 %s12, 2
      %s25 = sadd.s32 1, %s20
      %p26 = scmp.ge.s32.totalorder %s25, 1
      %s27 = scalar_select %p26, 0, %s25
      %s28 = sadd.s32 1, %s19
      %s29 = scalar_select %p26, %s28, %s19
      %p30 = scmp.ge.s32.totalorder %s29, 4
      %s31 = scalar_select %p30, 0, %s29
      %s32 = ssub.s32 %s19, %s31
      %s33 = ssub.s32 %s20, %s27
      %s34 = sor.u32 %s32, %s33
      %p35 = scmp.eq.s32.totalorder %s34, 0
      %s37 = sadd.s32 %s36, 1
      %s38 = scalar_select %p35, %s36, %s37
      %p41 = pneg %p35
      %p42 = scmp.eq.s32.totalorder %s12, 3
      %p43 = por %p41, %p42
      %p44 = scmp.ne.s32.totalorder %s36, %s39
      %p45 = scmp.eq.s32.totalorder %s12, 0
      %p46 = por %p44, %p45
      %p47 = scmp.ne.s32.totalorder %s36, %s39
      %p48 = scmp.eq.s32.totalorder %s17, 3
      %p49 = por %p47, %p48
      %p50 = scmp.ne.s32.totalorder %s39, %s40
      %p51 = scmp.eq.s32.totalorder %s17, 0
      %p52 = por %p50, %p51
      %p53 = scmp.ne.s32.totalorder %s39, %s40
      %p54 = scmp.eq.s32.totalorder %s18, 3
      %p55 = por %p53, %p54
      %p57 = scmp.ne.s32.totalorder %s40, %s56
      %p58 = scmp.eq.s32.totalorder %s18, 0
      %p59 = por %p57, %p58
      %s60 = ssub.s32 %s19, %s31
      %p61 = scmp.eq.s32.totalorder %s60, 0
      %s63 = sadd.s32 %s62, 1
      %s64 = scalar_select %p61, %s62, %s63
      %p67 = pneg %p61
      %p68 = scmp.eq.s32.totalorder %s12, 3
      %p69 = por %p67, %p68
      %p70 = scmp.ne.s32.totalorder %s62, %s65
      %p71 = scmp.eq.s32.totalorder %s12, 0
      %p72 = por %p70, %p71
      %p73 = scmp.ne.s32.totalorder %s62, %s65
      %p74 = scmp.eq.s32.totalorder %s17, 3
      %p75 = por %p73, %p74
      %p76 = scmp.ne.s32.totalorder %s65, %s66
      %p77 = scmp.eq.s32.totalorder %s17, 0
      %p78 = por %p76, %p77
      %p79 = scmp.ne.s32.totalorder %s65, %s66
      %p80 = scmp.eq.s32.totalorder %s18, 3
      %p81 = por %p79, %p80
      %p83 = scmp.ne.s32.totalorder %s66, %s82
      %p84 = scmp.eq.s32.totalorder %s18, 0
      %p85 = por %p83, %p84
      %s87 = sadd.s32 %s86, 1
      %p90 = scmp.eq.s32.totalorder %s12, 3
      %p91 = scmp.ne.s32.totalorder %s86, %s88
      %p92 = scmp.eq.s32.totalorder %s12, 0
      %p93 = por %p91, %p92
      %p94 = scmp.ne.s32.totalorder %s86, %s88
      %p95 = scmp.eq.s32.totalorder %s17, 3
      %p96 = por %p94, %p95
      %p97 = scmp.ne.s32.totalorder %s88, %s89
      %p98 = scmp.eq.s32.totalorder %s17, 0
      %p99 = por %p97, %p98
      %p100 = scmp.ne.s32.totalorder %s88, %s89
      %p101 = scmp.eq.s32.totalorder %s18, 3
      %p102 = por %p100, %p101
      %p104 = scmp.ne.s32.totalorder %s89, %s103
      %p105 = scmp.eq.s32.totalorder %s18, 0
      %p106 = por %p104, %p105
      %s107 = ssub.s32 %s19, %s31
      %s108 = ssub.s32 %s20, %s27
      %s109 = sor.u32 %s107, %s108
      %p110 = scmp.eq.s32.totalorder %s109, 0
      %s112 = sadd.s32 %s111, 1
      %s113 = scalar_select %p110, %s111, %s112
      %p116 = pneg %p110
      %p117 = scmp.eq.s32.totalorder %s12, 3
      %p118 = por %p116, %p117
      %p119 = scmp.ne.s32.totalorder %s111, %s114
      %p120 = scmp.eq.s32.totalorder %s12, 0
      %p121 = por %p119, %p120
      %p122 = scmp.ne.s32.totalorder %s111, %s114
      %p123 = scmp.eq.s32.totalorder %s17, 3
      %p124 = por %p122, %p123
      %p125 = scmp.ne.s32.totalorder %s114, %s115
      %p126 = scmp.eq.s32.totalorder %s17, 0
      %p127 = por %p125, %p126
      %p128 = scmp.ne.s32.totalorder %s114, %s115
      %p129 = scmp.eq.s32.totalorder %s18, 3
      %p130 = por %p128, %p129
      %p132 = scmp.ne.s32.totalorder %s115, %s131
      %p133 = scmp.eq.s32.totalorder %s18, 0
      %p134 = por %p132, %p133
      %p135 = scmp.le.s32.totalorder 1, %s12
      %p136 = scmp.lt.s32.totalorder %s12, 5
      %p137 = pnand %p135, %p136
      %p138 = pneg %p137
      // Predicated region
      $region9: #{tpu_custom_call.1} parent=5 // pred_check
        _
      $region10: #{tpu_custom_call.1} parent=5 // pred_check_branch
        %140 = sbr.rel (%p137) target = $region12
      $region11: #{tpu_custom_call.1} parent=5 // pred_region
        %s141 = ssub.s32 %s12, 1
        // Predicated region
        $region13: #{tpu_custom_call.1} parent=11 // pred_check
          %p142 = pneg %p99
        $region14: #{tpu_custom_call.1} parent=11 // pred_check_branch
          %144 = sbr.rel (%p142) target = $region16
        $region15: #{tpu_custom_call.1} parent=11 // pred_region
          _
        $region16: #{tpu_custom_call.1} parent=11 // pred_fallthru
          _
      $region12: #{tpu_custom_call.1} parent=5 // pred_fallthru
        _
      %p145 = scmp.lt.s32.totalorder %s12, 4
      // Predicated region
      $region17: #{tpu_custom_call.1} parent=5 // pred_check
        %p146 = pneg %p145
      $region18: #{tpu_custom_call.1} parent=5 // pred_check_branch
        %148 = sbr.rel (%p146) target = $region20
      $region19: #{tpu_custom_call.1} parent=5 // pred_region
        // Predicated region
        $region21: #{tpu_custom_call.1} parent=19 // pred_check
          %p149 = pneg %p46
        $region22: #{tpu_custom_call.1} parent=19 // pred_check_branch
          %151 = sbr.rel (%p149) target = $region24
        $region23: #{tpu_custom_call.1} parent=19 // pred_region
          %s152 = smul.u32 32, %s20
          %p153 = scmp.lt.s32.totalorder %s19, 3
          %s154 = scalar_select %p153, %s19, 3
          %p155 = scmp.lt.s32.totalorder %s152, 31
          %s156 = scalar_select %p155, %s152, 31
          %s157 = smul.addr %s154, 32
          %s158 = sadd.s32 %s156, %s157
          %s159 = smul.addr %s158, 4
          %s160 = scalar_lea.vmem %s0, %s159
          %s161 = smul.u32 32, %s20
        $region24: #{tpu_custom_call.1} parent=19 // pred_fallthru
          _
        // Predicated region
        $region25: #{tpu_custom_call.1} parent=19 // pred_check
          %p162 = pneg %p72
        $region26: #{tpu_custom_call.1} parent=19 // pred_check_branch
          %164 = sbr.rel (%p162) target = $region28
        $region27: #{tpu_custom_call.1} parent=19 // pred_region
          %p165 = scmp.lt.s32.totalorder %s19, 3
          %s166 = scalar_select %p165, %s19, 3
          %s167 = smul.addr %s166, 4
          %s168 = smul.addr %s167, 4
          %s169 = scalar_lea.vmem %s1, %s168
        $region28: #{tpu_custom_call.1} parent=19 // pred_fallthru
          _
      $region20: #{tpu_custom_call.1} parent=5 // pred_fallthru
        _
      %p170 = scmp.le.s32.totalorder 1, %s12
      %p171 = scmp.lt.s32.totalorder %s12, 5
      %p172 = pnand %p170, %p171
      %p173 = pneg %p172
      // Predicated region
      $region29: #{tpu_custom_call.1} parent=5 // pred_check
        _
      $region30: #{tpu_custom_call.1} parent=5 // pred_check_branch
        %175 = sbr.rel (%p172) target = $region32
      $region31: #{tpu_custom_call.1} parent=5 // pred_region
        %s176 = ssub.s32 %s12, 1
        %s177 = smul.u32 32, %s22
        %p178 = scmp.lt.s32.totalorder %s21, 3
        %s179 = scalar_select %p178, %s21, 3
        %p180 = scmp.lt.s32.totalorder %s177, 31
        %s181 = scalar_select %p180, %s177, 31
        %s182 = smul.addr %s179, 32
        %s183 = sadd.s32 %s181, %s182
        %s184 = smul.addr %s183, 4
        %s185 = scalar_lea.vmem %s0, %s184
        %p186 = pneg %p52
        %p187 = pneg %p49
        %p188 = scmp.lt.s32.totalorder %s21, 3
        %s189 = scalar_select %p188, %s21, 3
        %s190 = smul.addr %s189, 4
        %s191 = smul.addr %s190, 4
        %s192 = scalar_lea.vmem %s1, %s191
        %p193 = pneg %p78
        %p194 = pneg %p75
        %p195 = pneg %p99
        %p196 = pneg %p96
        %p197 = pneg %p127
        %p198 = pneg %p124
        %s199 = sand.u32 %s114, 1
        %s200 = scalar_lea.sflag [#allocation3], %s199
        %s201 = sand.u32 %s114, 1
        %s202 = smul.addr %s201, 128
        %s203 = scalar_lea.vmem [#allocation2], %s202
        %s204 = smul.u32 32, %s22
        %p205 = scmp.lt.s32.totalorder %s21, 3
        %s206 = scalar_select %p205, %s21, 3
        %p207 = scmp.lt.s32.totalorder %s204, 31
        %s208 = scalar_select %p207, %s204, 31
        %s209 = smul.addr %s206, 32
        %s210 = sadd.s32 %s208, %s209
        %s211 = smul.addr %s210, 4
        %s212 = scalar_lea.vmem %s0, %s211
        %s213 = smul.u32 32, %s22
        %p214 = scmp.lt.s32.totalorder %s21, 3
        %s215 = scalar_select %p214, %s21, 3
        %s216 = smul.addr %s215, 4
        %s217 = smul.addr %s216, 4
        %s218 = scalar_lea.vmem %s1, %s217
        %s219 = smul.u32 32, %s22
        %v221 = vld [vmem:[%s212] sm:$0xf]
        %v222 = vld [vmem:[%s212 + $0x4] sm:$0xf]
        %v223 = vld [vmem:[%s212 + $0x8] sm:$0xf]
        %v224 = vld [vmem:[%s212 + $0xc] sm:$0xf]
        %v225 = vld [vmem:[%s212 + $0x10] sm:$0xf]
        %v226 = vld [vmem:[%s212 + $0x14] sm:$0xf]
        %v227 = vld [vmem:[%s212 + $0x18] sm:$0xf]
        %v228 = vld [vmem:[%s212 + $0x1c] sm:$0xf]
        %v229 = vld [vmem:[%s212 + $0x20] sm:$0xf]
        %v230 = vld [vmem:[%s212 + $0x24] sm:$0xf]
        %v231 = vld [vmem:[%s212 + $0x28] sm:$0xf]
        %v232 = vld [vmem:[%s212 + $0x2c] sm:$0xf]
        %v233 = vld [vmem:[%s212 + $0x30] sm:$0xf]
        %v234 = vld [vmem:[%s212 + $0x34] sm:$0xf]
        %v235 = vld [vmem:[%s212 + $0x38] sm:$0xf]
        %v236 = vld [vmem:[%s212 + $0x3c] sm:$0xf]
        %v237 = vld [vmem:[%s212 + $0x40] sm:$0xf]
        %v238 = vld [vmem:[%s212 + $0x44] sm:$0xf]
        %v239 = vld [vmem:[%s212 + $0x48] sm:$0xf]
        %v240 = vld [vmem:[%s212 + $0x4c] sm:$0xf]
        %v241 = vld [vmem:[%s212 + $0x50] sm:$0xf]
        %v242 = vld [vmem:[%s212 + $0x54] sm:$0xf]
        %v243 = vld [vmem:[%s212 + $0x58] sm:$0xf]
        %v244 = vld [vmem:[%s212 + $0x5c] sm:$0xf]
        %v245 = vld [vmem:[%s212 + $0x60] sm:$0xf]
        %v246 = vld [vmem:[%s212 + $0x64] sm:$0xf]
        %v247 = vld [vmem:[%s212 + $0x68] sm:$0xf]
        %v248 = vld [vmem:[%s212 + $0x6c] sm:$0xf]
        %v249 = vld [vmem:[%s212 + $0x70] sm:$0xf]
        %v250 = vld [vmem:[%s212 + $0x74] sm:$0xf]
        %v251 = vld [vmem:[%s212 + $0x78] sm:$0xf]
        %v252 = vld [vmem:[%s212 + $0x7c] sm:$0xf]
        %v253 = vld [vmem:[%s218] sm:$0xf]
        %v254 = vld [vmem:[%s218 + $0x4] sm:$0xf]
        %v255 = vld [vmem:[%s218 + $0x8] sm:$0xf]
        %v256 = vld [vmem:[%s218 + $0xc] sm:$0xf]
        %v257 = vld [vmem:[%s2] sm:$0x1]
        %v259 = vperm.slane %v257, 0
        %v293 = vunpack.c.l.b16 %v221
        %v294 = vunpack.c.l.b16 %v222
        %v295 = vunpack.c.l.b16 %v223
        %v296 = vunpack.c.l.b16 %v224
        %v297 = vunpack.c.l.b16 %v225
        %v298 = vunpack.c.l.b16 %v226
        %v299 = vunpack.c.l.b16 %v227
        %v300 = vunpack.c.l.b16 %v228
        %v301 = vunpack.c.l.b16 %v229
        %v302 = vunpack.c.l.b16 %v230
        %v303 = vunpack.c.l.b16 %v231
        %v304 = vunpack.c.l.b16 %v232
        %v305 = vunpack.c.l.b16 %v233
        %v306 = vunpack.c.l.b16 %v234
        %v307 = vunpack.c.l.b16 %v235
        %v308 = vunpack.c.l.b16 %v236
        %v309 = vunpack.c.l.b16 %v237
        %v310 = vunpack.c.l.b16 %v238
        %v311 = vunpack.c.l.b16 %v239
        %v312 = vunpack.c.l.b16 %v240
        %v313 = vunpack.c.l.b16 %v241
        %v314 = vunpack.c.l.b16 %v242
        %v315 = vunpack.c.l.b16 %v243
        %v316 = vunpack.c.l.b16 %v244
        %v317 = vunpack.c.l.b16 %v245
        %v318 = vunpack.c.l.b16 %v246
        %v319 = vunpack.c.l.b16 %v247
        %v320 = vunpack.c.l.b16 %v248
        %v321 = vunpack.c.l.b16 %v249
        %v322 = vunpack.c.l.b16 %v250
        %v323 = vunpack.c.l.b16 %v251
        %v324 = vunpack.c.l.b16 %v252
        %v325 = vpack.c.b16 %v294, %v293
        %v326 = vpack.c.b16 %v296, %v295
        %v327 = vpack.c.b16 %v298, %v297
        %v328 = vpack.c.b16 %v300, %v299
        %v329 = vpack.c.b16 %v302, %v301
        %v330 = vpack.c.b16 %v304, %v303
        %v331 = vpack.c.b16 %v306, %v305
        %v332 = vpack.c.b16 %v308, %v307
        %v333 = vpack.c.b16 %v310, %v309
        %v334 = vpack.c.b16 %v312, %v311
        %v335 = vpack.c.b16 %v314, %v313
        %v336 = vpack.c.b16 %v316, %v315
        %v337 = vpack.c.b16 %v318, %v317
        %v338 = vpack.c.b16 %v320, %v319
        %v339 = vpack.c.b16 %v322, %v321
        %v340 = vpack.c.b16 %v324, %v323
        %v345 = vunpack.c.l.b16 %v253
        %v346 = vunpack.c.l.b16 %v254
        %v347 = vunpack.c.l.b16 %v255
        %v348 = vunpack.c.l.b16 %v256
        %v349 = vpack.c.b16 %v346, %v345
        %v350 = vpack.c.b16 %v348, %v347
        %vm353 = vcmask 261120
        %v355 = vsel %vm353, %v325, 0
        %v358 = vsel %vm353, %v326, 0
        %v361 = vsel %vm353, %v327, 0
        %v364 = vsel %vm353, %v328, 0
        %v367 = vsel %vm353, %v329, 0
        %v370 = vsel %vm353, %v330, 0
        %v373 = vsel %vm353, %v331, 0
        %v376 = vsel %vm353, %v332, 0
        %v379 = vsel %vm353, %v333, 0
        %v382 = vsel %vm353, %v334, 0
        %v385 = vsel %vm353, %v335, 0
        %v388 = vsel %vm353, %v336, 0
        %v391 = vsel %vm353, %v337, 0
        %v394 = vsel %vm353, %v338, 0
        %v397 = vsel %vm353, %v339, 0
        %v400 = vsel %vm353, %v340, 0
        %402 = vmatpush.bf16.msra.mxu0 0
        %403 = vmatpush.bf16.msra.mxu0 0
        %404 = vmatpush.bf16.msra.mxu0 0
        %405 = vmatpush.bf16.msra.mxu0 0
        %406 = vmatpush.bf16.msra.mxu0 0
        %407 = vmatpush.bf16.msra.mxu0 0
        %408 = vmatpush.bf16.msra.mxu0 %v350
        %409 = vmatpush.bf16.msra.mxu0 %v349
        %410 = vmatmul.bf16.gmra.mxu0 %v355
        %v411 = vpop.f32.mrf.mxu0
        %v412 = vadd.f32 %v259, %v411
        %v413 = vpop.f32.mrf.mxu0
        %v414 = vadd.f32 %v259, %v413
        %415 = vmatmul.bf16.gmra.mxu0 %v358
        %v416 = vpop.f32.mrf.mxu0
        %v417 = vadd.f32 %v259, %v416
        %v418 = vpop.f32.mrf.mxu0
        %v419 = vadd.f32 %v259, %v418
        %420 = vmatmul.bf16.gmra.mxu0 %v361
        %v421 = vpop.f32.mrf.mxu0
        %v422 = vadd.f32 %v259, %v421
        %v423 = vpop.f32.mrf.mxu0
        %v424 = vadd.f32 %v259, %v423
        %425 = vmatmul.bf16.gmra.mxu0 %v364
        %v426 = vpop.f32.mrf.mxu0
        %v427 = vadd.f32 %v259, %v426
        %v428 = vpop.f32.mrf.mxu0
        %v429 = vadd.f32 %v259, %v428
        %430 = vmatmul.bf16.gmra.mxu0 %v367
        %v431 = vpop.f32.mrf.mxu0
        %v432 = vadd.f32 %v259, %v431
        %v433 = vpop.f32.mrf.mxu0
        %v434 = vadd.f32 %v259, %v433
        %435 = vmatmul.bf16.gmra.mxu0 %v370
        %v436 = vpop.f32.mrf.mxu0
        %v437 = vadd.f32 %v259, %v436
        %v438 = vpop.f32.mrf.mxu0
        %v439 = vadd.f32 %v259, %v438
        %440 = vmatmul.bf16.gmra.mxu0 %v373
        %v441 = vpop.f32.mrf.mxu0
        %v442 = vadd.f32 %v259, %v441
        %v443 = vpop.f32.mrf.mxu0
        %v444 = vadd.f32 %v259, %v443
        %445 = vmatmul.bf16.gmra.mxu0 %v376
        %v446 = vpop.f32.mrf.mxu0
        %v447 = vadd.f32 %v259, %v446
        %v448 = vpop.f32.mrf.mxu0
        %v449 = vadd.f32 %v259, %v448
        %450 = vmatmul.bf16.gmra.mxu0 %v379
        %v451 = vpop.f32.mrf.mxu0
        %v452 = vadd.f32 %v259, %v451
        %v453 = vpop.f32.mrf.mxu0
        %v454 = vadd.f32 %v259, %v453
        %455 = vmatmul.bf16.gmra.mxu0 %v382
        %v456 = vpop.f32.mrf.mxu0
        %v457 = vadd.f32 %v259, %v456
        %v458 = vpop.f32.mrf.mxu0
        %v459 = vadd.f32 %v259, %v458
        %460 = vmatmul.bf16.gmra.mxu0 %v385
        %v461 = vpop.f32.mrf.mxu0
        %v462 = vadd.f32 %v259, %v461
        %v463 = vpop.f32.mrf.mxu0
        %v464 = vadd.f32 %v259, %v463
        %465 = vmatmul.bf16.gmra.mxu0 %v388
        %v466 = vpop.f32.mrf.mxu0
        %v467 = vadd.f32 %v259, %v466
        %v468 = vpop.f32.mrf.mxu0
        %v469 = vadd.f32 %v259, %v468
        %470 = vmatmul.bf16.gmra.mxu0 %v391
        %v471 = vpop.f32.mrf.mxu0
        %v472 = vadd.f32 %v259, %v471
        %v473 = vpop.f32.mrf.mxu0
        %v474 = vadd.f32 %v259, %v473
        %475 = vmatmul.bf16.gmra.mxu0 %v394
        %v476 = vpop.f32.mrf.mxu0
        %v477 = vadd.f32 %v259, %v476
        %v478 = vpop.f32.mrf.mxu0
        %v479 = vadd.f32 %v259, %v478
        %480 = vmatmul.bf16.gmra.mxu0 %v397
        %v481 = vpop.f32.mrf.mxu0
        %v482 = vadd.f32 %v259, %v481
        %v483 = vpop.f32.mrf.mxu0
        %v484 = vadd.f32 %v259, %v483
        %485 = vmatmul.bf16.gmra.mxu0 %v400
        %v486 = vpop.f32.mrf.mxu0
        %v487 = vadd.f32 %v259, %v486
        %v488 = vpop.f32.mrf.mxu0
        %v489 = vadd.f32 %v259, %v488
        %490 = vdwg.mxu0
        %v491 = vmax.f32 %v412, 0.0
        %v492 = vmax.f32 %v414, 0.0
        %v493 = vmax.f32 %v417, 0.0
        %v494 = vmax.f32 %v419, 0.0
        %v495 = vmax.f32 %v422, 0.0
        %v496 = vmax.f32 %v424, 0.0
        %v497 = vmax.f32 %v427, 0.0
        %v498 = vmax.f32 %v429, 0.0
        %v499 = vmax.f32 %v432, 0.0
        %v500 = vmax.f32 %v434, 0.0
        %v501 = vmax.f32 %v437, 0.0
        %v502 = vmax.f32 %v439, 0.0
        %v503 = vmax.f32 %v442, 0.0
        %v504 = vmax.f32 %v444, 0.0
        %v505 = vmax.f32 %v447, 0.0
        %v506 = vmax.f32 %v449, 0.0
        %v507 = vmax.f32 %v452, 0.0
        %v508 = vmax.f32 %v454, 0.0
        %v509 = vmax.f32 %v457, 0.0
        %v510 = vmax.f32 %v459, 0.0
        %v511 = vmax.f32 %v462, 0.0
        %v512 = vmax.f32 %v464, 0.0
        %v513 = vmax.f32 %v467, 0.0
        %v514 = vmax.f32 %v469, 0.0
        %v515 = vmax.f32 %v472, 0.0
        %v516 = vmax.f32 %v474, 0.0
        %v517 = vmax.f32 %v477, 0.0
        %v518 = vmax.f32 %v479, 0.0
        %v519 = vmax.f32 %v482, 0.0
        %v520 = vmax.f32 %v484, 0.0
        %v521 = vmax.f32 %v487, 0.0
        %v522 = vmax.f32 %v489, 0.0
        %v523 = vpack.c.bf16 %v491, %v491
        %v524 = vpack.c.bf16 %v492, %v492
        %v525 = vpack.c.bf16 %v493, %v493
        %v526 = vpack.c.bf16 %v494, %v494
        %v527 = vpack.c.bf16 %v495, %v495
        %v528 = vpack.c.bf16 %v496, %v496
        %v529 = vpack.c.bf16 %v497, %v497
        %v530 = vpack.c.bf16 %v498, %v498
        %v531 = vpack.c.bf16 %v499, %v499
        %v532 = vpack.c.bf16 %v500, %v500
        %v533 = vpack.c.bf16 %v501, %v501
        %v534 = vpack.c.bf16 %v502, %v502
        %v535 = vpack.c.bf16 %v503, %v503
        %v536 = vpack.c.bf16 %v504, %v504
        %v537 = vpack.c.bf16 %v505, %v505
        %v538 = vpack.c.bf16 %v506, %v506
        %v539 = vpack.c.bf16 %v507, %v507
        %v540 = vpack.c.bf16 %v508, %v508
        %v541 = vpack.c.bf16 %v509, %v509
        %v542 = vpack.c.bf16 %v510, %v510
        %v543 = vpack.c.bf16 %v511, %v511
        %v544 = vpack.c.bf16 %v512, %v512
        %v545 = vpack.c.bf16 %v513, %v513
        %v546 = vpack.c.bf16 %v514, %v514
        %v547 = vpack.c.bf16 %v515, %v515
        %v548 = vpack.c.bf16 %v516, %v516
        %v549 = vpack.c.bf16 %v517, %v517
        %v550 = vpack.c.bf16 %v518, %v518
        %v551 = vpack.c.bf16 %v519, %v519
        %v552 = vpack.c.bf16 %v520, %v520
        %v553 = vpack.c.bf16 %v521, %v521
        %v554 = vpack.c.bf16 %v522, %v522
        %555 = vst [vmem:[%s203] sm:$0xf] %v523
        %556 = vst [vmem:[%s203 + $0x4] sm:$0xf] %v524
        %557 = vst [vmem:[%s203 + $0x8] sm:$0xf] %v525
        %558 = vst [vmem:[%s203 + $0xc] sm:$0xf] %v526
        %559 = vst [vmem:[%s203 + $0x10] sm:$0xf] %v527
        %560 = vst [vmem:[%s203 + $0x14] sm:$0xf] %v528
        %561 = vst [vmem:[%s203 + $0x18] sm:$0xf] %v529
        %562 = vst [vmem:[%s203 + $0x1c] sm:$0xf] %v530
        %563 = vst [vmem:[%s203 + $0x20] sm:$0xf] %v531
        %564 = vst [vmem:[%s203 + $0x24] sm:$0xf] %v532
        %565 = vst [vmem:[%s203 + $0x28] sm:$0xf] %v533
        %566 = vst [vmem:[%s203 + $0x2c] sm:$0xf] %v534
        %567 = vst [vmem:[%s203 + $0x30] sm:$0xf] %v535
        %568 = vst [vmem:[%s203 + $0x34] sm:$0xf] %v536
        %569 = vst [vmem:[%s203 + $0x38] sm:$0xf] %v537
        %570 = vst [vmem:[%s203 + $0x3c] sm:$0xf] %v538
        %571 = vst [vmem:[%s203 + $0x40] sm:$0xf] %v539
        %572 = vst [vmem:[%s203 + $0x44] sm:$0xf] %v540
        %573 = vst [vmem:[%s203 + $0x48] sm:$0xf] %v541
        %574 = vst [vmem:[%s203 + $0x4c] sm:$0xf] %v542
        %575 = vst [vmem:[%s203 + $0x50] sm:$0xf] %v543
        %576 = vst [vmem:[%s203 + $0x54] sm:$0xf] %v544
        %577 = vst [vmem:[%s203 + $0x58] sm:$0xf] %v545
        %578 = vst [vmem:[%s203 + $0x5c] sm:$0xf] %v546
        %579 = vst [vmem:[%s203 + $0x60] sm:$0xf] %v547
        %580 = vst [vmem:[%s203 + $0x64] sm:$0xf] %v548
        %581 = vst [vmem:[%s203 + $0x68] sm:$0xf] %v549
        %582 = vst [vmem:[%s203 + $0x6c] sm:$0xf] %v550
        %583 = vst [vmem:[%s203 + $0x70] sm:$0xf] %v551
        %584 = vst [vmem:[%s203 + $0x74] sm:$0xf] %v552
        %585 = vst [vmem:[%s203 + $0x78] sm:$0xf] %v553
        %586 = vst [vmem:[%s203 + $0x7c] sm:$0xf] %v554
        %s587 = sand.u32 %s114, 1
        %s588 = scalar_lea.sflag [#allocation3], %s587
        %s589 = sand.u32 %s114, 1
        %s590 = smul.addr %s589, 128
        %s591 = scalar_lea.vmem [#allocation2], %s590
        // Predicated region
        $region33: #{tpu_custom_call.1} parent=31 // pred_check
          %p592 = pneg %p124
        $region34: #{tpu_custom_call.1} parent=31 // pred_check_branch
          %594 = sbr.rel (%p592) target = $region36
        $region35: #{tpu_custom_call.1} parent=31 // pred_region
          %s595 = smul.u32 32, %s22
          %597 = vsyncadd %s588, 0
          %s598 = smul.addr %s21, 32
          %s599 = sadd.s32 %s595, %s598
          %s600 = smul.addr %s599, 4
          %s601 = scalar_lea.hbm %s3, %s600
          %s602 = sshll.u32 %s591, 4
          %s603 = int_to_ptr.vmem [resolvable:$true] %s602
          %s604 = sshll.u32 %s601, 4
          %s605 = int_to_ptr.hbm [resolvable:$true] %s604
          %610 = dma.vmem_to_hbm [thread:$0]  %s603, 2048, %s605, %s588, 64, 64, 4
        $region36: #{tpu_custom_call.1} parent=31 // pred_fallthru
          _
      $region32: #{tpu_custom_call.1} parent=5 // pred_fallthru
        _
      %p611 = scmp.le.s32.totalorder 2, %s12
      // Predicated region
      $region37: #{tpu_custom_call.1} parent=5 // pred_check
        %p612 = pneg %p611
      $region38: #{tpu_custom_call.1} parent=5 // pred_check_branch
        %614 = sbr.rel (%p612) target = $region40
      $region39: #{tpu_custom_call.1} parent=5 // pred_region
        %s615 = ssub.s32 %s12, 2
        // Predicated region
        $region41: #{tpu_custom_call.1} parent=39 // pred_check
          %p616 = pneg %p130
        $region42: #{tpu_custom_call.1} parent=39 // pred_check_branch
          %618 = sbr.rel (%p616) target = $region44
        $region43: #{tpu_custom_call.1} parent=39 // pred_region
          %s619 = sand.u32 %s115, 1
          %s620 = scalar_lea.sflag [#allocation3], %s619
          %s621 = sand.u32 %s115, 1
          %s622 = smul.addr %s621, 128
          %s623 = scalar_lea.vmem [#allocation2], %s622
          %625 = dma.done %s620, 2048
        $region44: #{tpu_custom_call.1} parent=39 // pred_fallthru
          _
      $region40: #{tpu_custom_call.1} parent=5 // pred_fallthru
        _
    $region6: #{tpu_custom_call.1} parent=1 // loop_footer
      %s16 = sadd.s32 1, %s12
    $region7: #{tpu_custom_call.1} parent=1 // loop_footer_branch
      %11 = sbr.rel target = $region3
    $region8: #{tpu_custom_call.1} parent=1 // loop_exit
      _
    %626 = vsyncpa [#allocation3], 1
    %s627 = scalar_lea.sflag [#allocation3], 1
    %628 = vsyncpa %s627, 1

</llo_original>
